<compile_context>
chip_gen: v5e
topology: v5e:2x2
jax: 0.10.0
libtpu: 0.0.40
codegen_flags: <defaults>
</compile_context>

<pallas_src>
import jax
import jax.numpy as jnp
from jax.experimental import pallas as pl
from jax.experimental.pallas import tpu as pltpu

KH, KW = 5, 5
STRIDE = 2
PAD = 2
C = 72          # fixed by the module (groups == in_channels == out_channels == 72)
CP = 128        # lane-padded channel count


def _dwconv_kernel(x_ref, w_ref, o_ref):
    """Depthwise 5x5 / stride-2 MAC hot path for one output-row tile.

    x_ref: (1, Hp2, 2, Wp2, 2*CP)  one padded image, parity-split by a free reshape:
           x_pad[n, 2*hh + a, 2*ww + b, c] == x_ref[0, hh, a, ww, b*CP + c]
    w_ref: (KH*KW, CP)             tap-major, lane-padded weights
    o_ref: (1, TH, Wo, CP)         one tile of output rows
    """
    _, TH, Wo, Cp = o_ref.shape
    t = pl.program_id(1)
    row0 = pl.multiple_of(t * TH, TH)

    w = w_ref[...].astype(jnp.float32)                 # loaded & cast once per tile
    acc = jnp.zeros((TH, Wo, Cp), jnp.float32)

    for kw in range(KW):                               # 5 column taps
        b = kw % 2                                     # W parity -> lane-aligned block
        wo_off = kw // 2                               # sublane offset (hoisted below)
        for a in range(2):                             # H parity
            # One sublane-offset slice per (kw, parity): 10 loads per tile, not 25.
            slab = x_ref[0, pl.ds(row0, TH + 2), a,
                         wo_off:wo_off + Wo,
                         b * Cp:(b + 1) * Cp].astype(jnp.float32)   # (TH+2, Wo, Cp)
            for kh in range(a, KH, 2):                 # row taps of this parity
                dh = kh // 2                           # free major-dim slice
                acc = acc + slab[dh:dh + TH] * w[kh * KW + kw]

    o_ref[0] = acc.astype(o_ref.dtype)


def depthwise_conv2d_5x5_s2(x_nchw, w_oihw):
    """x_nchw: (N, C, H, W); w_oihw: (C, 1, 5, 5) [PyTorch OIHW depthwise]. Returns (N, C, Ho, Wo)."""
    n, c, h, wdim = x_nchw.shape
    assert c == C and w_oihw.shape == (C, 1, KH, KW)
    assert h % 2 == 0 and wdim % 2 == 0, "even spatial dims expected (e.g. 56x56 / 16x16)"
    ho = (h + 2 * PAD - KH) // STRIDE + 1
    wo = (wdim + 2 * PAD - KW) // STRIDE + 1
    hp, wp = h + 2 * PAD, wdim + 2 * PAD
    hp2, wp2 = hp // 2, wp // 2

    # output-row tile height (keeps the f32 accumulator ~16 vregs)
    th = 4 if ho % 4 == 0 else (2 if ho % 2 == 0 else 1)

    # --- layout glue, reduced to: transpose, one pad, one free reshape ---
    x = jnp.transpose(x_nchw, (0, 2, 3, 1))                               # (N, H, W, C)
    xp = jnp.pad(x, ((0, 0), (PAD, PAD), (PAD, PAD), (0, CP - C)))        # (N, Hp, Wp, 128)
    xr = xp.reshape(n, hp2, 2, wp2, 2 * CP)                               # free reshape: parity dims

    w = jnp.transpose(w_oihw[:, 0, :, :], (1, 2, 0)).reshape(KH * KW, C)  # (25, 72)
    w = jnp.pad(w, ((0, 0), (0, CP - C)))                                 # (25, 128) tile-aligned

    out = pl.pallas_call(
        _dwconv_kernel,
        out_shape=jax.ShapeDtypeStruct((n, ho, wo, CP), x_nchw.dtype),
        grid=(n, ho // th),
        in_specs=[
            # one padded image resident per batch index (same block across the row-tile axis)
            pl.BlockSpec((1, hp2, 2, wp2, 2 * CP), lambda nb, t: (nb, 0, 0, 0, 0)),
            pl.BlockSpec((KH * KW, CP), lambda nb, t: (0, 0)),
        ],
        out_specs=pl.BlockSpec((1, th, wo, CP), lambda nb, t: (nb, t, 0, 0)),
        compiler_params=pltpu.CompilerParams(
            dimension_semantics=("parallel", "parallel")),
    )(xr, w)

    # drop the channel padding, back to NCHW (PyTorch interface)
    # TODO(synk): in a full NHWC model these boundary transposes disappear entirely.
    return jnp.transpose(out[:, :, :, :C], (0, 3, 1, 2))


if __name__ == "__main__":
    key = jax.random.PRNGKey(0)
    kx, kwt = jax.random.split(key)
    # Small shapes consistent with the module: channels fixed at 72 by the depthwise conv,
    # batch=2 to exercise the batch grid axis, spatial 16x16 (original module uses 1x72x56x56).
    x = jax.random.normal(kx, (2, C, 16, 16), dtype=jnp.float32)
    w = jax.random.normal(kwt, (C, 1, KH, KW), dtype=jnp.float32) * 0.1

    y = depthwise_conv2d_5x5_s2(x, w)
    y = jax.block_until_ready(y)

    # Reference: XLA grouped conv (same semantics as the PyTorch module).
    y_ref = jax.lax.conv_general_dilated(
        x, w, window_strides=(STRIDE, STRIDE),
        padding=((PAD, PAD), (PAD, PAD)),
        feature_group_count=C,
        dimension_numbers=("NCHW", "OIHW", "NCHW"),
        precision=jax.lax.Precision.HIGHEST)

    assert y.shape == (2, C, 8, 8), y.shape
    err = float(jnp.max(jnp.abs(y - y_ref)))
    assert jnp.allclose(y, y_ref, atol=2e-4, rtol=2e-4), err
    print("KERNEL_OK")
</pallas_src>

<mosaic_0001>
module attributes {stable_mosaic.version = 11 : i64} {
  func.func @_dwconv_kernel(%arg0: i32, %arg1: i32, %arg2: memref<1x10x2x10x256xf32, #tpu.memory_space<vmem>>, %arg3: memref<25x128xf32, #tpu.memory_space<vmem>>, %arg4: memref<1x4x8x128xf32, #tpu.memory_space<vmem>>) attributes {dimension_semantics = [#tpu.dimension_semantics<parallel>, #tpu.dimension_semantics<parallel>], iteration_bounds = array<i64: 2, 2>, scalar_prefetch = 0 : i64, scratch_operands = 0 : i64, tpu.core_type = #tpu.core_type<tc>, window_params = [{transform_indices = @transform_0, window_bounds = array<i64: 1, 10, 2, 10, 256>}, {pipeline_mode = #tpu.pipeline_mode<synchronous>, transform_indices = @transform_1, window_bounds = array<i64: 25, 128>}, {transform_indices = @transform_2, window_bounds = array<i64: 1, 4, 8, 128>}]} {
    %c4_i32 = arith.constant 4 : i32
    %0 = arith.muli %arg1, %c4_i32 : i32
    %1 = tpu.assume_multiple %0, 4 : i32
    %c0 = arith.constant 0 : index
    %c0_0 = arith.constant 0 : index
    %2 = vector.load %arg3[%c0, %c0_0] : memref<25x128xf32, #tpu.memory_space<vmem>>, vector<25x128xf32>
    %cst = arith.constant 0.000000e+00 : f32
    %3 = vector.broadcast %cst : f32 to vector<4x8x128xf32>
    %c0_1 = arith.constant 0 : index
    %4 = arith.index_cast %1 : i32 to index
    %c0_2 = arith.constant 0 : index
    %c0_3 = arith.constant 0 : index
    %c0_4 = arith.constant 0 : index
    %5 = vector.load %arg2[%c0_1, %4, %c0_2, %c0_3, %c0_4] : memref<1x10x2x10x256xf32, #tpu.memory_space<vmem>>, vector<1x6x1x8x128xf32>
    %6 = vector.shape_cast %5 : vector<1x6x1x8x128xf32> to vector<6x8x128xf32>
    %7 = vector.extract_strided_slice %6 {offsets = [0, 0, 0], sizes = [4, 8, 128], strides = [1, 1, 1]} : vector<6x8x128xf32> to vector<4x8x128xf32>
    %8 = vector.extract_strided_slice %2 {offsets = [0, 0], sizes = [1, 128], strides = [1, 1]} : vector<25x128xf32> to vector<1x128xf32>
    %9 = vector.shape_cast %8 : vector<1x128xf32> to vector<128xf32>
    %10 = vector.shape_cast %9 : vector<128xf32> to vector<1x1x128xf32>
    %11 = vector.broadcast %10 : vector<1x1x128xf32> to vector<4x8x128xf32>
    %12 = arith.mulf %7, %11 : vector<4x8x128xf32>
    %13 = arith.addf %3, %12 : vector<4x8x128xf32>
    %14 = vector.extract_strided_slice %6 {offsets = [1, 0, 0], sizes = [4, 8, 128], strides = [1, 1, 1]} : vector<6x8x128xf32> to vector<4x8x128xf32>
    %15 = vector.extract_strided_slice %2 {offsets = [10, 0], sizes = [1, 128], strides = [1, 1]} : vector<25x128xf32> to vector<1x128xf32>
    %16 = vector.shape_cast %15 : vector<1x128xf32> to vector<128xf32>
    %17 = vector.shape_cast %16 : vector<128xf32> to vector<1x1x128xf32>
    %18 = vector.broadcast %17 : vector<1x1x128xf32> to vector<4x8x128xf32>
    %19 = arith.mulf %14, %18 : vector<4x8x128xf32>
    %20 = arith.addf %13, %19 : vector<4x8x128xf32>
    %21 = vector.extract_strided_slice %6 {offsets = [2, 0, 0], sizes = [4, 8, 128], strides = [1, 1, 1]} : vector<6x8x128xf32> to vector<4x8x128xf32>
    %22 = vector.extract_strided_slice %2 {offsets = [20, 0], sizes = [1, 128], strides = [1, 1]} : vector<25x128xf32> to vector<1x128xf32>
    %23 = vector.shape_cast %22 : vector<1x128xf32> to vector<128xf32>
    %24 = vector.shape_cast %23 : vector<128xf32> to vector<1x1x128xf32>
    %25 = vector.broadcast %24 : vector<1x1x128xf32> to vector<4x8x128xf32>
    %26 = arith.mulf %21, %25 : vector<4x8x128xf32>
    %27 = arith.addf %20, %26 : vector<4x8x128xf32>
    %c0_5 = arith.constant 0 : index
    %28 = arith.index_cast %1 : i32 to index
    %c1 = arith.constant 1 : index
    %c0_6 = arith.constant 0 : index
    %c0_7 = arith.constant 0 : index
    %29 = vector.load %arg2[%c0_5, %28, %c1, %c0_6, %c0_7] : memref<1x10x2x10x256xf32, #tpu.memory_space<vmem>>, vector<1x6x1x8x128xf32>
    %30 = vector.shape_cast %29 : vector<1x6x1x8x128xf32> to vector<6x8x128xf32>
    %31 = vector.extract_strided_slice %30 {offsets = [0, 0, 0], sizes = [4, 8, 128], strides = [1, 1, 1]} : vector<6x8x128xf32> to vector<4x8x128xf32>
    %32 = vector.extract_strided_slice %2 {offsets = [5, 0], sizes = [1, 128], strides = [1, 1]} : vector<25x128xf32> to vector<1x128xf32>
    %33 = vector.shape_cast %32 : vector<1x128xf32> to vector<128xf32>
    %34 = vector.shape_cast %33 : vector<128xf32> to vector<1x1x128xf32>
    %35 = vector.broadcast %34 : vector<1x1x128xf32> to vector<4x8x128xf32>
    %36 = arith.mulf %31, %35 : vector<4x8x128xf32>
    %37 = arith.addf %27, %36 : vector<4x8x128xf32>
    %38 = vector.extract_strided_slice %30 {offsets = [1, 0, 0], sizes = [4, 8, 128], strides = [1, 1, 1]} : vector<6x8x128xf32> to vector<4x8x128xf32>
    %39 = vector.extract_strided_slice %2 {offsets = [15, 0], sizes = [1, 128], strides = [1, 1]} : vector<25x128xf32> to vector<1x128xf32>
    %40 = vector.shape_cast %39 : vector<1x128xf32> to vector<128xf32>
    %41 = vector.shape_cast %40 : vector<128xf32> to vector<1x1x128xf32>
    %42 = vector.broadcast %41 : vector<1x1x128xf32> to vector<4x8x128xf32>
    %43 = arith.mulf %38, %42 : vector<4x8x128xf32>
    %44 = arith.addf %37, %43 : vector<4x8x128xf32>
    %c0_8 = arith.constant 0 : index
    %45 = arith.index_cast %1 : i32 to index
    %c0_9 = arith.constant 0 : index
    %c0_10 = arith.constant 0 : index
    %c128 = arith.constant 128 : index
    %46 = vector.load %arg2[%c0_8, %45, %c0_9, %c0_10, %c128] : memref<1x10x2x10x256xf32, #tpu.memory_space<vmem>>, vector<1x6x1x8x128xf32>
    %47 = vector.shape_cast %46 : vector<1x6x1x8x128xf32> to vector<6x8x128xf32>
    %48 = vector.extract_strided_slice %47 {offsets = [0, 0, 0], sizes = [4, 8, 128], strides = [1, 1, 1]} : vector<6x8x128xf32> to vector<4x8x128xf32>
    %49 = vector.extract_strided_slice %2 {offsets = [1, 0], sizes = [1, 128], strides = [1, 1]} : vector<25x128xf32> to vector<1x128xf32>
    %50 = vector.shape_cast %49 : vector<1x128xf32> to vector<128xf32>
    %51 = vector.shape_cast %50 : vector<128xf32> to vector<1x1x128xf32>
    %52 = vector.broadcast %51 : vector<1x1x128xf32> to vector<4x8x128xf32>
    %53 = arith.mulf %48, %52 : vector<4x8x128xf32>
    %54 = arith.addf %44, %53 : vector<4x8x128xf32>
    %55 = vector.extract_strided_slice %47 {offsets = [1, 0, 0], sizes = [4, 8, 128], strides = [1, 1, 1]} : vector<6x8x128xf32> to vector<4x8x128xf32>
    %56 = vector.extract_strided_slice %2 {offsets = [11, 0], sizes = [1, 128], strides = [1, 1]} : vector<25x128xf32> to vector<1x128xf32>
    %57 = vector.shape_cast %56 : vector<1x128xf32> to vector<128xf32>
    %58 = vector.shape_cast %57 : vector<128xf32> to vector<1x1x128xf32>
    %59 = vector.broadcast %58 : vector<1x1x128xf32> to vector<4x8x128xf32>
    %60 = arith.mulf %55, %59 : vector<4x8x128xf32>
    %61 = arith.addf %54, %60 : vector<4x8x128xf32>
    %62 = vector.extract_strided_slice %47 {offsets = [2, 0, 0], sizes = [4, 8, 128], strides = [1, 1, 1]} : vector<6x8x128xf32> to vector<4x8x128xf32>
    %63 = vector.extract_strided_slice %2 {offsets = [21, 0], sizes = [1, 128], strides = [1, 1]} : vector<25x128xf32> to vector<1x128xf32>
    %64 = vector.shape_cast %63 : vector<1x128xf32> to vector<128xf32>
    %65 = vector.shape_cast %64 : vector<128xf32> to vector<1x1x128xf32>
    %66 = vector.broadcast %65 : vector<1x1x128xf32> to vector<4x8x128xf32>
    %67 = arith.mulf %62, %66 : vector<4x8x128xf32>
    %68 = arith.addf %61, %67 : vector<4x8x128xf32>
    %c0_11 = arith.constant 0 : index
    %69 = arith.index_cast %1 : i32 to index
    %c1_12 = arith.constant 1 : index
    %c0_13 = arith.constant 0 : index
    %c128_14 = arith.constant 128 : index
    %70 = vector.load %arg2[%c0_11, %69, %c1_12, %c0_13, %c128_14] : memref<1x10x2x10x256xf32, #tpu.memory_space<vmem>>, vector<1x6x1x8x128xf32>
    %71 = vector.shape_cast %70 : vector<1x6x1x8x128xf32> to vector<6x8x128xf32>
    %72 = vector.extract_strided_slice %71 {offsets = [0, 0, 0], sizes = [4, 8, 128], strides = [1, 1, 1]} : vector<6x8x128xf32> to vector<4x8x128xf32>
    %73 = vector.extract_strided_slice %2 {offsets = [6, 0], sizes = [1, 128], strides = [1, 1]} : vector<25x128xf32> to vector<1x128xf32>
    %74 = vector.shape_cast %73 : vector<1x128xf32> to vector<128xf32>
    %75 = vector.shape_cast %74 : vector<128xf32> to vector<1x1x128xf32>
    %76 = vector.broadcast %75 : vector<1x1x128xf32> to vector<4x8x128xf32>
    %77 = arith.mulf %72, %76 : vector<4x8x128xf32>
    %78 = arith.addf %68, %77 : vector<4x8x128xf32>
    %79 = vector.extract_strided_slice %71 {offsets = [1, 0, 0], sizes = [4, 8, 128], strides = [1, 1, 1]} : vector<6x8x128xf32> to vector<4x8x128xf32>
    %80 = vector.extract_strided_slice %2 {offsets = [16, 0], sizes = [1, 128], strides = [1, 1]} : vector<25x128xf32> to vector<1x128xf32>
    %81 = vector.shape_cast %80 : vector<1x128xf32> to vector<128xf32>
    %82 = vector.shape_cast %81 : vector<128xf32> to vector<1x1x128xf32>
    %83 = vector.broadcast %82 : vector<1x1x128xf32> to vector<4x8x128xf32>
    %84 = arith.mulf %79, %83 : vector<4x8x128xf32>
    %85 = arith.addf %78, %84 : vector<4x8x128xf32>
    %c0_15 = arith.constant 0 : index
    %86 = arith.index_cast %1 : i32 to index
    %c0_16 = arith.constant 0 : index
    %c1_17 = arith.constant 1 : index
    %c0_18 = arith.constant 0 : index
    %87 = vector.load %arg2[%c0_15, %86, %c0_16, %c1_17, %c0_18] : memref<1x10x2x10x256xf32, #tpu.memory_space<vmem>>, vector<1x6x1x8x128xf32>
    %88 = vector.shape_cast %87 : vector<1x6x1x8x128xf32> to vector<6x8x128xf32>
    %89 = vector.extract_strided_slice %88 {offsets = [0, 0, 0], sizes = [4, 8, 128], strides = [1, 1, 1]} : vector<6x8x128xf32> to vector<4x8x128xf32>
    %90 = vector.extract_strided_slice %2 {offsets = [2, 0], sizes = [1, 128], strides = [1, 1]} : vector<25x128xf32> to vector<1x128xf32>
    %91 = vector.shape_cast %90 : vector<1x128xf32> to vector<128xf32>
    %92 = vector.shape_cast %91 : vector<128xf32> to vector<1x1x128xf32>
    %93 = vector.broadcast %92 : vector<1x1x128xf32> to vector<4x8x128xf32>
    %94 = arith.mulf %89, %93 : vector<4x8x128xf32>
    %95 = arith.addf %85, %94 : vector<4x8x128xf32>
    %96 = vector.extract_strided_slice %88 {offsets = [1, 0, 0], sizes = [4, 8, 128], strides = [1, 1, 1]} : vector<6x8x128xf32> to vector<4x8x128xf32>
    %97 = vector.extract_strided_slice %2 {offsets = [12, 0], sizes = [1, 128], strides = [1, 1]} : vector<25x128xf32> to vector<1x128xf32>
    %98 = vector.shape_cast %97 : vector<1x128xf32> to vector<128xf32>
    %99 = vector.shape_cast %98 : vector<128xf32> to vector<1x1x128xf32>
    %100 = vector.broadcast %99 : vector<1x1x128xf32> to vector<4x8x128xf32>
    %101 = arith.mulf %96, %100 : vector<4x8x128xf32>
    %102 = arith.addf %95, %101 : vector<4x8x128xf32>
    %103 = vector.extract_strided_slice %88 {offsets = [2, 0, 0], sizes = [4, 8, 128], strides = [1, 1, 1]} : vector<6x8x128xf32> to vector<4x8x128xf32>
    %104 = vector.extract_strided_slice %2 {offsets = [22, 0], sizes = [1, 128], strides = [1, 1]} : vector<25x128xf32> to vector<1x128xf32>
    %105 = vector.shape_cast %104 : vector<1x128xf32> to vector<128xf32>
    %106 = vector.shape_cast %105 : vector<128xf32> to vector<1x1x128xf32>
    %107 = vector.broadcast %106 : vector<1x1x128xf32> to vector<4x8x128xf32>
    %108 = arith.mulf %103, %107 : vector<4x8x128xf32>
    %109 = arith.addf %102, %108 : vector<4x8x128xf32>
    %c0_19 = arith.constant 0 : index
    %110 = arith.index_cast %1 : i32 to index
    %c1_20 = arith.constant 1 : index
    %c1_21 = arith.constant 1 : index
    %c0_22 = arith.constant 0 : index
    %111 = vector.load %arg2[%c0_19, %110, %c1_20, %c1_21, %c0_22] : memref<1x10x2x10x256xf32, #tpu.memory_space<vmem>>, vector<1x6x1x8x128xf32>
    %112 = vector.shape_cast %111 : vector<1x6x1x8x128xf32> to vector<6x8x128xf32>
    %113 = vector.extract_strided_slice %112 {offsets = [0, 0, 0], sizes = [4, 8, 128], strides = [1, 1, 1]} : vector<6x8x128xf32> to vector<4x8x128xf32>
    %114 = vector.extract_strided_slice %2 {offsets = [7, 0], sizes = [1, 128], strides = [1, 1]} : vector<25x128xf32> to vector<1x128xf32>
    %115 = vector.shape_cast %114 : vector<1x128xf32> to vector<128xf32>
    %116 = vector.shape_cast %115 : vector<128xf32> to vector<1x1x128xf32>
    %117 = vector.broadcast %116 : vector<1x1x128xf32> to vector<4x8x128xf32>
    %118 = arith.mulf %113, %117 : vector<4x8x128xf32>
    %119 = arith.addf %109, %118 : vector<4x8x128xf32>
    %120 = vector.extract_strided_slice %112 {offsets = [1, 0, 0], sizes = [4, 8, 128], strides = [1, 1, 1]} : vector<6x8x128xf32> to vector<4x8x128xf32>
    %121 = vector.extract_strided_slice %2 {offsets = [17, 0], sizes = [1, 128], strides = [1, 1]} : vector<25x128xf32> to vector<1x128xf32>
    %122 = vector.shape_cast %121 : vector<1x128xf32> to vector<128xf32>
    %123 = vector.shape_cast %122 : vector<128xf32> to vector<1x1x128xf32>
    %124 = vector.broadcast %123 : vector<1x1x128xf32> to vector<4x8x128xf32>
    %125 = arith.mulf %120, %124 : vector<4x8x128xf32>
    %126 = arith.addf %119, %125 : vector<4x8x128xf32>
    %c0_23 = arith.constant 0 : index
    %127 = arith.index_cast %1 : i32 to index
    %c0_24 = arith.constant 0 : index
    %c1_25 = arith.constant 1 : index
    %c128_26 = arith.constant 128 : index
    %128 = vector.load %arg2[%c0_23, %127, %c0_24, %c1_25, %c128_26] : memref<1x10x2x10x256xf32, #tpu.memory_space<vmem>>, vector<1x6x1x8x128xf32>
    %129 = vector.shape_cast %128 : vector<1x6x1x8x128xf32> to vector<6x8x128xf32>
    %130 = vector.extract_strided_slice %129 {offsets = [0, 0, 0], sizes = [4, 8, 128], strides = [1, 1, 1]} : vector<6x8x128xf32> to vector<4x8x128xf32>
    %131 = vector.extract_strided_slice %2 {offsets = [3, 0], sizes = [1, 128], strides = [1, 1]} : vector<25x128xf32> to vector<1x128xf32>
    %132 = vector.shape_cast %131 : vector<1x128xf32> to vector<128xf32>
    %133 = vector.shape_cast %132 : vector<128xf32> to vector<1x1x128xf32>
    %134 = vector.broadcast %133 : vector<1x1x128xf32> to vector<4x8x128xf32>
    %135 = arith.mulf %130, %134 : vector<4x8x128xf32>
    %136 = arith.addf %126, %135 : vector<4x8x128xf32>
    %137 = vector.extract_strided_slice %129 {offsets = [1, 0, 0], sizes = [4, 8, 128], strides = [1, 1, 1]} : vector<6x8x128xf32> to vector<4x8x128xf32>
    %138 = vector.extract_strided_slice %2 {offsets = [13, 0], sizes = [1, 128], strides = [1, 1]} : vector<25x128xf32> to vector<1x128xf32>
    %139 = vector.shape_cast %138 : vector<1x128xf32> to vector<128xf32>
    %140 = vector.shape_cast %139 : vector<128xf32> to vector<1x1x128xf32>
    %141 = vector.broadcast %140 : vector<1x1x128xf32> to vector<4x8x128xf32>
    %142 = arith.mulf %137, %141 : vector<4x8x128xf32>
    %143 = arith.addf %136, %142 : vector<4x8x128xf32>
    %144 = vector.extract_strided_slice %129 {offsets = [2, 0, 0], sizes = [4, 8, 128], strides = [1, 1, 1]} : vector<6x8x128xf32> to vector<4x8x128xf32>
    %145 = vector.extract_strided_slice %2 {offsets = [23, 0], sizes = [1, 128], strides = [1, 1]} : vector<25x128xf32> to vector<1x128xf32>
    %146 = vector.shape_cast %145 : vector<1x128xf32> to vector<128xf32>
    %147 = vector.shape_cast %146 : vector<128xf32> to vector<1x1x128xf32>
    %148 = vector.broadcast %147 : vector<1x1x128xf32> to vector<4x8x128xf32>
    %149 = arith.mulf %144, %148 : vector<4x8x128xf32>
    %150 = arith.addf %143, %149 : vector<4x8x128xf32>
    %c0_27 = arith.constant 0 : index
    %151 = arith.index_cast %1 : i32 to index
    %c1_28 = arith.constant 1 : index
    %c1_29 = arith.constant 1 : index
    %c128_30 = arith.constant 128 : index
    %152 = vector.load %arg2[%c0_27, %151, %c1_28, %c1_29, %c128_30] : memref<1x10x2x10x256xf32, #tpu.memory_space<vmem>>, vector<1x6x1x8x128xf32>
    %153 = vector.shape_cast %152 : vector<1x6x1x8x128xf32> to vector<6x8x128xf32>
    %154 = vector.extract_strided_slice %153 {offsets = [0, 0, 0], sizes = [4, 8, 128], strides = [1, 1, 1]} : vector<6x8x128xf32> to vector<4x8x128xf32>
    %155 = vector.extract_strided_slice %2 {offsets = [8, 0], sizes = [1, 128], strides = [1, 1]} : vector<25x128xf32> to vector<1x128xf32>
    %156 = vector.shape_cast %155 : vector<1x128xf32> to vector<128xf32>
    %157 = vector.shape_cast %156 : vector<128xf32> to vector<1x1x128xf32>
    %158 = vector.broadcast %157 : vector<1x1x128xf32> to vector<4x8x128xf32>
    %159 = arith.mulf %154, %158 : vector<4x8x128xf32>
    %160 = arith.addf %150, %159 : vector<4x8x128xf32>
    %161 = vector.extract_strided_slice %153 {offsets = [1, 0, 0], sizes = [4, 8, 128], strides = [1, 1, 1]} : vector<6x8x128xf32> to vector<4x8x128xf32>
    %162 = vector.extract_strided_slice %2 {offsets = [18, 0], sizes = [1, 128], strides = [1, 1]} : vector<25x128xf32> to vector<1x128xf32>
    %163 = vector.shape_cast %162 : vector<1x128xf32> to vector<128xf32>
    %164 = vector.shape_cast %163 : vector<128xf32> to vector<1x1x128xf32>
    %165 = vector.broadcast %164 : vector<1x1x128xf32> to vector<4x8x128xf32>
    %166 = arith.mulf %161, %165 : vector<4x8x128xf32>
    %167 = arith.addf %160, %166 : vector<4x8x128xf32>
    %c0_31 = arith.constant 0 : index
    %168 = arith.index_cast %1 : i32 to index
    %c0_32 = arith.constant 0 : index
    %c2 = arith.constant 2 : index
    %c0_33 = arith.constant 0 : index
    %169 = vector.load %arg2[%c0_31, %168, %c0_32, %c2, %c0_33] : memref<1x10x2x10x256xf32, #tpu.memory_space<vmem>>, vector<1x6x1x8x128xf32>
    %170 = vector.shape_cast %169 : vector<1x6x1x8x128xf32> to vector<6x8x128xf32>
    %171 = vector.extract_strided_slice %170 {offsets = [0, 0, 0], sizes = [4, 8, 128], strides = [1, 1, 1]} : vector<6x8x128xf32> to vector<4x8x128xf32>
    %172 = vector.extract_strided_slice %2 {offsets = [4, 0], sizes = [1, 128], strides = [1, 1]} : vector<25x128xf32> to vector<1x128xf32>
    %173 = vector.shape_cast %172 : vector<1x128xf32> to vector<128xf32>
    %174 = vector.shape_cast %173 : vector<128xf32> to vector<1x1x128xf32>
    %175 = vector.broadcast %174 : vector<1x1x128xf32> to vector<4x8x128xf32>
    %176 = arith.mulf %171, %175 : vector<4x8x128xf32>
    %177 = arith.addf %167, %176 : vector<4x8x128xf32>
    %178 = vector.extract_strided_slice %170 {offsets = [1, 0, 0], sizes = [4, 8, 128], strides = [1, 1, 1]} : vector<6x8x128xf32> to vector<4x8x128xf32>
    %179 = vector.extract_strided_slice %2 {offsets = [14, 0], sizes = [1, 128], strides = [1, 1]} : vector<25x128xf32> to vector<1x128xf32>
    %180 = vector.shape_cast %179 : vector<1x128xf32> to vector<128xf32>
    %181 = vector.shape_cast %180 : vector<128xf32> to vector<1x1x128xf32>
    %182 = vector.broadcast %181 : vector<1x1x128xf32> to vector<4x8x128xf32>
    %183 = arith.mulf %178, %182 : vector<4x8x128xf32>
    %184 = arith.addf %177, %183 : vector<4x8x128xf32>
    %185 = vector.extract_strided_slice %170 {offsets = [2, 0, 0], sizes = [4, 8, 128], strides = [1, 1, 1]} : vector<6x8x128xf32> to vector<4x8x128xf32>
    %186 = vector.extract_strided_slice %2 {offsets = [24, 0], sizes = [1, 128], strides = [1, 1]} : vector<25x128xf32> to vector<1x128xf32>
    %187 = vector.shape_cast %186 : vector<1x128xf32> to vector<128xf32>
    %188 = vector.shape_cast %187 : vector<128xf32> to vector<1x1x128xf32>
    %189 = vector.broadcast %188 : vector<1x1x128xf32> to vector<4x8x128xf32>
    %190 = arith.mulf %185, %189 : vector<4x8x128xf32>
    %191 = arith.addf %184, %190 : vector<4x8x128xf32>
    %c0_34 = arith.constant 0 : index
    %192 = arith.index_cast %1 : i32 to index
    %c1_35 = arith.constant 1 : index
    %c2_36 = arith.constant 2 : index
    %c0_37 = arith.constant 0 : index
    %193 = vector.load %arg2[%c0_34, %192, %c1_35, %c2_36, %c0_37] : memref<1x10x2x10x256xf32, #tpu.memory_space<vmem>>, vector<1x6x1x8x128xf32>
    %194 = vector.shape_cast %193 : vector<1x6x1x8x128xf32> to vector<6x8x128xf32>
    %195 = vector.extract_strided_slice %194 {offsets = [0, 0, 0], sizes = [4, 8, 128], strides = [1, 1, 1]} : vector<6x8x128xf32> to vector<4x8x128xf32>
    %196 = vector.extract_strided_slice %2 {offsets = [9, 0], sizes = [1, 128], strides = [1, 1]} : vector<25x128xf32> to vector<1x128xf32>
    %197 = vector.shape_cast %196 : vector<1x128xf32> to vector<128xf32>
    %198 = vector.shape_cast %197 : vector<128xf32> to vector<1x1x128xf32>
    %199 = vector.broadcast %198 : vector<1x1x128xf32> to vector<4x8x128xf32>
    %200 = arith.mulf %195, %199 : vector<4x8x128xf32>
    %201 = arith.addf %191, %200 : vector<4x8x128xf32>
    %202 = vector.extract_strided_slice %194 {offsets = [1, 0, 0], sizes = [4, 8, 128], strides = [1, 1, 1]} : vector<6x8x128xf32> to vector<4x8x128xf32>
    %203 = vector.extract_strided_slice %2 {offsets = [19, 0], sizes = [1, 128], strides = [1, 1]} : vector<25x128xf32> to vector<1x128xf32>
    %204 = vector.shape_cast %203 : vector<1x128xf32> to vector<128xf32>
    %205 = vector.shape_cast %204 : vector<128xf32> to vector<1x1x128xf32>
    %206 = vector.broadcast %205 : vector<1x1x128xf32> to vector<4x8x128xf32>
    %207 = arith.mulf %202, %206 : vector<4x8x128xf32>
    %208 = arith.addf %201, %207 : vector<4x8x128xf32>
    %c0_38 = arith.constant 0 : index
    %c0_39 = arith.constant 0 : index
    %c0_40 = arith.constant 0 : index
    %c0_41 = arith.constant 0 : index
    %209 = vector.load %arg4[%c0_38, %c0_39, %c0_40, %c0_41] : memref<1x4x8x128xf32, #tpu.memory_space<vmem>>, vector<1x4x8x128xf32>
    %210 = vector.shape_cast %209 : vector<1x4x8x128xf32> to vector<4x8x128xf32>
    %211 = vector.shape_cast %208 : vector<4x8x128xf32> to vector<1x4x8x128xf32>
    tpu.vector_store %arg4[%c0_38, %c0_39, %c0_40, %c0_41], %211 {strides = array<i32>} : memref<1x4x8x128xf32, #tpu.memory_space<vmem>>, vector<1x4x8x128xf32>,
    return
  }
  func.func @transform_0(%arg0: i32, %arg1: i32) -> (i32, i32, i32, i32, i32) {
    %c0_i32 = arith.constant 0 : i32
    %c0_i32_0 = arith.constant 0 : i32
    %c0_i32_1 = arith.constant 0 : i32
    %c0_i32_2 = arith.constant 0 : i32
    %c0_i32_3 = arith.constant 0 : i32
    return %arg0, %c0_i32, %c0_i32_0, %c0_i32_1, %c0_i32_2 : i32, i32, i32, i32, i32
  }
  func.func @transform_1(%arg0: i32, %arg1: i32) -> (i32, i32) {
    %c0_i32 = arith.constant 0 : i32
    %c0_i32_0 = arith.constant 0 : i32
    %c0_i32_1 = arith.constant 0 : i32
    return %c0_i32, %c0_i32_0 : i32, i32
  }
  func.func @transform_2(%arg0: i32, %arg1: i32) -> (i32, i32, i32, i32) {
    %c0_i32 = arith.constant 0 : i32
    %c0_i32_0 = arith.constant 0 : i32
    %c0_i32_1 = arith.constant 0 : i32
    return %arg0, %arg1, %c0_i32, %c0_i32_0 : i32, i32, i32, i32
  }
}

</mosaic_0001>

<llo_original>
// kernel: tpu_custom_call.1
$region0: #{tpu_custom_call.1}
  #allocation0 [shape = 'u32[]', space=smem, size = 0x4, offset = 0x4, fixed_abs, tag = 'smem constant byte address 0x4 - core index']
  #allocation1 [shape = 'u32[72,128]{1,0:T(1,128)}', space=vmem, size = 0x9000, scoped, tag = 'internal scratch']
  %s0 = inlined_call_operand.vmem [shape: f32[2,10,2,10,256], index: 0, kind: input, shape index: {}]
  %s1 = inlined_call_operand.vmem [shape: f32[25,128], index: 1, kind: input, shape index: {}]
  %s2 = inlined_call_operand.hbm [shape: f32[2,8,8,128], index: 2, kind: output, shape index: {}]
  %s3 = sld [smem:[#allocation0]]
  $region41: #{tpu_custom_call.1} parent=0
    _
  %s5 = ssub.s32 1, %s3
  %s6 = scalar_select 0, %s5, %s3
  $region1: #{tpu_custom_call.1} parent=0
    #allocation2 [shape = 'u8[32768]{0}', space=vmem, size = 0x8000, scoped, tag = 'output window, operand 0']
    #allocation3 [shape = 's32[2]{0}', space=sflag, size = 0x8, scoped, tag = 'scoped memory for tpu_custom_call.1']
    %7 = vsyncpa [#allocation3], 0
    %s8 = scalar_lea.sflag [#allocation3], 1
    %9 = vsyncpa %s8, 0
    loop: start=0, step=1, limit=6
    $region2: #{tpu_custom_call.1} parent=1 // loop_pre_header
      _
    $region3: #{tpu_custom_call.1} parent=1 // loop_header
      %s11 = sphi 0, %s15
      %p12 = scmp.ge.s32.totalorder %s11, 6
      %s18 = sphi 0, %s30
      %s19 = sphi 0, %s26
      %s20 = sphi 0, %s18
      %s21 = sphi 0, %s19
      %s22 = sphi 0, %s20
      %s23 = sphi 0, %s21
      %s33 = sphi 0, %s35
      %s36 = sphi 0, %s33
      %s37 = sphi 0, %s36
      %s53 = sphi 0, %s37
      %s57 = sphi 0, %s57
      %s59 = sphi 0, %s57
      %s60 = sphi 0, %s59
      %s74 = sphi 0, %s60
      %s82 = sphi 0, %s84
      %s85 = sphi 0, %s82
      %s86 = sphi 0, %s85
      %s102 = sphi 0, %s86
    $region4: #{tpu_custom_call.1} parent=1 // loop_header_branch
      %14 = sbr.rel (%p12) target = $region8
    $region5: #{tpu_custom_call.1} parent=1 // loop_body
      %s16 = ssub.s32 %s11, 1
      %s17 = ssub.s32 %s11, 2
      %s24 = sadd.s32 1, %s19
      %p25 = scmp.ge.s32.totalorder %s24, 2
      %s26 = scalar_select %p25, 0, %s24
      %s27 = sadd.s32 1, %s18
      %s28 = scalar_select %p25, %s27, %s18
      %p29 = scmp.ge.s32.totalorder %s28, 2
      %s30 = scalar_select %p29, 0, %s28
      %s31 = ssub.s32 %s18, %s30
      %p32 = scmp.eq.s32.totalorder %s31, 0
      %s34 = sadd.s32 %s33, 1
      %s35 = scalar_select %p32, %s33, %s34
      %p38 = pneg %p32
      %p39 = scmp.eq.s32.totalorder %s11, 3
      %p40 = por %p38, %p39
      %p41 = scmp.ne.s32.totalorder %s33, %s36
      %p42 = scmp.eq.s32.totalorder %s11, 0
      %p43 = por %p41, %p42
      %p44 = scmp.ne.s32.totalorder %s33, %s36
      %p45 = scmp.eq.s32.totalorder %s16, 3
      %p46 = por %p44, %p45
      %p47 = scmp.ne.s32.totalorder %s36, %s37
      %p48 = scmp.eq.s32.totalorder %s16, 0
      %p49 = por %p47, %p48
      %p50 = scmp.ne.s32.totalorder %s36, %s37
      %p51 = scmp.eq.s32.totalorder %s17, 3
      %p52 = por %p50, %p51
      %p54 = scmp.ne.s32.totalorder %s37, %s53
      %p55 = scmp.eq.s32.totalorder %s17, 0
      %p56 = por %p54, %p55
      %s58 = sadd.s32 %s57, 1
      %p61 = scmp.eq.s32.totalorder %s11, 3
      %p62 = scmp.ne.s32.totalorder %s57, %s59
      %p63 = scmp.eq.s32.totalorder %s11, 0
      %p64 = por %p62, %p63
      %p65 = scmp.ne.s32.totalorder %s57, %s59
      %p66 = scmp.eq.s32.totalorder %s16, 3
      %p67 = por %p65, %p66
      %p68 = scmp.ne.s32.totalorder %s59, %s60
      %p69 = scmp.eq.s32.totalorder %s16, 0
      %p70 = por %p68, %p69
      %p71 = scmp.ne.s32.totalorder %s59, %s60
      %p72 = scmp.eq.s32.totalorder %s17, 3
      %p73 = por %p71, %p72
      %p75 = scmp.ne.s32.totalorder %s60, %s74
      %p76 = scmp.eq.s32.totalorder %s17, 0
      %p77 = por %p75, %p76
      %s78 = ssub.s32 %s18, %s30
      %s79 = ssub.s32 %s19, %s26
      %s80 = sor.u32 %s78, %s79
      %p81 = scmp.eq.s32.totalorder %s80, 0
      %s83 = sadd.s32 %s82, 1
      %s84 = scalar_select %p81, %s82, %s83
      %p87 = pneg %p81
      %p88 = scmp.eq.s32.totalorder %s11, 3
      %p89 = por %p87, %p88
      %p90 = scmp.ne.s32.totalorder %s82, %s85
      %p91 = scmp.eq.s32.totalorder %s11, 0
      %p92 = por %p90, %p91
      %p93 = scmp.ne.s32.totalorder %s82, %s85
      %p94 = scmp.eq.s32.totalorder %s16, 3
      %p95 = por %p93, %p94
      %p96 = scmp.ne.s32.totalorder %s85, %s86
      %p97 = scmp.eq.s32.totalorder %s16, 0
      %p98 = por %p96, %p97
      %p99 = scmp.ne.s32.totalorder %s85, %s86
      %p100 = scmp.eq.s32.totalorder %s17, 3
      %p101 = por %p99, %p100
      %p103 = scmp.ne.s32.totalorder %s86, %s102
      %p104 = scmp.eq.s32.totalorder %s17, 0
      %p105 = por %p103, %p104
      %p106 = scmp.le.s32.totalorder 1, %s11
      %p107 = scmp.lt.s32.totalorder %s11, 5
      %p108 = pnand %p106, %p107
      %p109 = pneg %p108
      // Predicated region
      $region9: #{tpu_custom_call.1} parent=5 // pred_check
        _
      $region10: #{tpu_custom_call.1} parent=5 // pred_check_branch
        %111 = sbr.rel (%p108) target = $region12
      $region11: #{tpu_custom_call.1} parent=5 // pred_region
        %s112 = ssub.s32 %s11, 1
        // Predicated region
        $region13: #{tpu_custom_call.1} parent=11 // pred_check
          %p113 = pneg %p70
        $region14: #{tpu_custom_call.1} parent=11 // pred_check_branch
          %115 = sbr.rel (%p113) target = $region16
        $region15: #{tpu_custom_call.1} parent=11 // pred_region
          _
        $region16: #{tpu_custom_call.1} parent=11 // pred_fallthru
          _
      $region12: #{tpu_custom_call.1} parent=5 // pred_fallthru
        _
      %p116 = scmp.lt.s32.totalorder %s11, 4
      // Predicated region
      $region17: #{tpu_custom_call.1} parent=5 // pred_check
        %p117 = pneg %p116
      $region18: #{tpu_custom_call.1} parent=5 // pred_check_branch
        %119 = sbr.rel (%p117) target = $region20
      $region19: #{tpu_custom_call.1} parent=5 // pred_region
        // Predicated region
        $region21: #{tpu_custom_call.1} parent=19 // pred_check
          %p120 = pneg %p43
        $region22: #{tpu_custom_call.1} parent=19 // pred_check_branch
          %122 = sbr.rel (%p120) target = $region24
        $region23: #{tpu_custom_call.1} parent=19 // pred_region
          %p123 = scmp.lt.s32.totalorder %s18, 1
          %s124 = scalar_select %p123, %s18, 1
          %s125 = smul.addr %s124, 80
          %s126 = smul.addr %s125, 8
          %s127 = scalar_lea.vmem %s0, %s126
        $region24: #{tpu_custom_call.1} parent=19 // pred_fallthru
          _
      $region20: #{tpu_custom_call.1} parent=5 // pred_fallthru
        _
      %p128 = scmp.le.s32.totalorder 1, %s11
      %p129 = scmp.lt.s32.totalorder %s11, 5
      %p130 = pnand %p128, %p129
      %p131 = pneg %p130
      // Predicated region
      $region25: #{tpu_custom_call.1} parent=5 // pred_check
        _
      $region26: #{tpu_custom_call.1} parent=5 // pred_check_branch
        %133 = sbr.rel (%p130) target = $region28
      $region27: #{tpu_custom_call.1} parent=5 // pred_region
        %s134 = ssub.s32 %s11, 1
        %p135 = scmp.lt.s32.totalorder %s20, 1
        %s136 = scalar_select %p135, %s20, 1
        %s137 = smul.addr %s136, 80
        %s138 = smul.addr %s137, 8
        %s139 = scalar_lea.vmem %s0, %s138
        %p140 = pneg %p49
        %p141 = pneg %p46
        %p142 = pneg %p70
        %p143 = pneg %p67
        %p144 = pneg %p98
        %p145 = pneg %p95
        %s146 = sand.u32 %s85, 1
        %s147 = scalar_lea.sflag [#allocation3], %s146
        %s148 = sand.u32 %s85, 1
        %s149 = smul.addr %s148, 32
        %s150 = scalar_lea.vmem [#allocation2], %s149
        %p151 = scmp.lt.s32.totalorder %s20, 1
        %s152 = scalar_select %p151, %s20, 1
        %s153 = smul.addr %s152, 80
        %s154 = smul.addr %s153, 8
        %s155 = scalar_lea.vmem %s0, %s154
        %s156 = smul.u32 4, %s21
        %s157 = smul.u32 %s21, 4
        %v158 = vld [vmem:[%s1] sm:$0xff]
        %v159 = vld [vmem:[%s1 + $0x8] sm:$0xff]
        %v160 = vld [vmem:[%s1 + $0x10] sm:$0xff]
        %v161 = vld [vmem:[%s1 + $0x18] sm:$0x1]
        %s162 = smul.u32 %s157, 8
        %s163 = smul.addr %s162, 8
        %s164 = scalar_lea.vmem %s155, %s163
        %v165 = vld [vmem:[%s164] sm:$0xff]
        %v166 = vld [vmem:[%s164 + $0x40] sm:$0xff]
        %v167 = vld [vmem:[%s164 + $0x80] sm:$0xff]
        %v168 = vld [vmem:[%s164 + $0xc0] sm:$0xff]
        %v169 = vld [vmem:[%s164 + $0x100] sm:$0xff]
        %v170 = vld [vmem:[%s164 + $0x140] sm:$0xff]
        %v171 = vperm.slane %v158, 0
        %v172 = vmul.f32 %v165, %v171
        %v173 = vmul.f32 %v166, %v171
        %v174 = vmul.f32 %v167, %v171
        %v175 = vmul.f32 %v168, %v171
        %v176 = vadd.f32 %v172, 0.0
        %v177 = vadd.f32 %v173, 0.0
        %v178 = vadd.f32 %v174, 0.0
        %v179 = vadd.f32 %v175, 0.0
        %v180 = vperm.slane %v159, 2
        %v181 = vmul.f32 %v166, %v180
        %v182 = vmul.f32 %v167, %v180
        %v183 = vmul.f32 %v168, %v180
        %v184 = vmul.f32 %v169, %v180
        %v185 = vadd.f32 %v176, %v181
        %v186 = vadd.f32 %v177, %v182
        %v187 = vadd.f32 %v178, %v183
        %v188 = vadd.f32 %v179, %v184
        %v189 = vperm.slane %v160, 4
        %v190 = vmul.f32 %v167, %v189
        %v191 = vmul.f32 %v168, %v189
        %v192 = vmul.f32 %v169, %v189
        %v193 = vmul.f32 %v170, %v189
        %v194 = vadd.f32 %v185, %v190
        %v195 = vadd.f32 %v186, %v191
        %v196 = vadd.f32 %v187, %v192
        %v197 = vadd.f32 %v188, %v193
        %s198 = sadd.s32 4, %s162
        %s199 = smul.addr %s198, 8
        %s200 = scalar_lea.vmem %s155, %s199
        %v201 = vld [vmem:[%s200] sm:$0xff]
        %v202 = vld [vmem:[%s200 + $0x40] sm:$0xff]
        %v203 = vld [vmem:[%s200 + $0x80] sm:$0xff]
        %v204 = vld [vmem:[%s200 + $0xc0] sm:$0xff]
        %v205 = vld [vmem:[%s200 + $0x100] sm:$0xff]
        %v206 = vperm.slane %v158, 5
        %v207 = vmul.f32 %v201, %v206
        %v208 = vmul.f32 %v202, %v206
        %v209 = vmul.f32 %v203, %v206
        %v210 = vmul.f32 %v204, %v206
        %v211 = vadd.f32 %v194, %v207
        %v212 = vadd.f32 %v195, %v208
        %v213 = vadd.f32 %v196, %v209
        %v214 = vadd.f32 %v197, %v210
        %v215 = vperm.slane %v159, 7
        %v216 = vmul.f32 %v202, %v215
        %v217 = vmul.f32 %v203, %v215
        %v218 = vmul.f32 %v204, %v215
        %v219 = vmul.f32 %v205, %v215
        %v220 = vadd.f32 %v211, %v216
        %v221 = vadd.f32 %v212, %v217
        %v222 = vadd.f32 %v213, %v218
        %v223 = vadd.f32 %v214, %v219
        %v224 = vld [vmem:[%s164 + $0x8] sm:$0xff]
        %v225 = vld [vmem:[%s164 + $0x48] sm:$0xff]
        %v226 = vld [vmem:[%s164 + $0x88] sm:$0xff]
        %v227 = vld [vmem:[%s164 + $0xc8] sm:$0xff]
        %v228 = vld [vmem:[%s164 + $0x108] sm:$0xff]
        %v229 = vld [vmem:[%s164 + $0x148] sm:$0xff]
        %v230 = vperm.slane %v158, 1
        %v231 = vmul.f32 %v224, %v230
        %v232 = vmul.f32 %v225, %v230
        %v233 = vmul.f32 %v226, %v230
        %v234 = vmul.f32 %v227, %v230
        %v235 = vadd.f32 %v220, %v231
        %v236 = vadd.f32 %v221, %v232
        %v237 = vadd.f32 %v222, %v233
        %v238 = vadd.f32 %v223, %v234
        %v239 = vperm.slane %v159, 3
        %v240 = vmul.f32 %v225, %v239
        %v241 = vmul.f32 %v226, %v239
        %v242 = vmul.f32 %v227, %v239
        %v243 = vmul.f32 %v228, %v239
        %v244 = vadd.f32 %v235, %v240
        %v245 = vadd.f32 %v236, %v241
        %v246 = vadd.f32 %v237, %v242
        %v247 = vadd.f32 %v238, %v243
        %v248 = vperm.slane %v160, 5
        %v249 = vmul.f32 %v226, %v248
        %v250 = vmul.f32 %v227, %v248
        %v251 = vmul.f32 %v228, %v248
        %v252 = vmul.f32 %v229, %v248
        %v253 = vadd.f32 %v244, %v249
        %v254 = vadd.f32 %v245, %v250
        %v255 = vadd.f32 %v246, %v251
        %v256 = vadd.f32 %v247, %v252
        %v257 = vld [vmem:[%s200 + $0x8] sm:$0xff]
        %v258 = vld [vmem:[%s200 + $0x48] sm:$0xff]
        %v259 = vld [vmem:[%s200 + $0x88] sm:$0xff]
        %v260 = vld [vmem:[%s200 + $0xc8] sm:$0xff]
        %v261 = vld [vmem:[%s200 + $0x108] sm:$0xff]
        %v262 = vperm.slane %v158, 6
        %v263 = vmul.f32 %v257, %v262
        %v264 = vmul.f32 %v258, %v262
        %v265 = vmul.f32 %v259, %v262
        %v266 = vmul.f32 %v260, %v262
        %v267 = vadd.f32 %v253, %v263
        %v268 = vadd.f32 %v254, %v264
        %v269 = vadd.f32 %v255, %v265
        %v270 = vadd.f32 %v256, %v266
        %v271 = vperm.slane %v160, 0
        %v272 = vmul.f32 %v258, %v271
        %v273 = vmul.f32 %v259, %v271
        %v274 = vmul.f32 %v260, %v271
        %v275 = vmul.f32 %v261, %v271
        %v276 = vadd.f32 %v267, %v272
        %v277 = vadd.f32 %v268, %v273
        %v278 = vadd.f32 %v269, %v274
        %v279 = vadd.f32 %v270, %v275
        %v280 = vld [vmem:[%s164] sm:$0xfe]
        %v281 = vld [vmem:[%s164 + $0x10] sm:$0x1]
        %v282 = vld [vmem:[%s164 + $0x40] sm:$0xfe]
        %v283 = vld [vmem:[%s164 + $0x50] sm:$0x1]
        %v284 = vld [vmem:[%s164 + $0x80] sm:$0xfe]
        %v285 = vld [vmem:[%s164 + $0x90] sm:$0x1]
        %v286 = vld [vmem:[%s164 + $0xc0] sm:$0xfe]
        %v287 = vld [vmem:[%s164 + $0xd0] sm:$0x1]
        %v288 = vld [vmem:[%s164 + $0x100] sm:$0xfe]
        %v289 = vld [vmem:[%s164 + $0x110] sm:$0x1]
        %v290 = vld [vmem:[%s164 + $0x140] sm:$0xfe]
        %v291 = vld [vmem:[%s164 + $0x150] sm:$0x1]
        %v292 = vperm.slane %v158, 2
        %v293 = vmul.f32 %v280, %v292
        %v294 = vmul.f32 %v281, %v292
        %v295 = vmul.f32 %v282, %v292
        %v296 = vmul.f32 %v283, %v292
        %v297 = vmul.f32 %v284, %v292
        %v298 = vmul.f32 %v285, %v292
        %v299 = vmul.f32 %v286, %v292
        %v300 = vmul.f32 %v287, %v292
        %vm309 = vcmask 1046528
        %v310 = vrot.slane %v293, 1
        %v311 = vrot.slane %v294, 1
        %v312 = vsel %vm309, %v310, %v311
        %v313 = vrot.slane %v295, 1
        %v314 = vrot.slane %v296, 1
        %v315 = vsel %vm309, %v313, %v314
        %v316 = vrot.slane %v297, 1
        %v317 = vrot.slane %v298, 1
        %v318 = vsel %vm309, %v316, %v317
        %v319 = vrot.slane %v299, 1
        %v320 = vrot.slane %v300, 1
        %v321 = vsel %vm309, %v319, %v320
        %v326 = vadd.f32 %v276, %v312
        %v327 = vadd.f32 %v277, %v315
        %v328 = vadd.f32 %v278, %v318
        %v329 = vadd.f32 %v279, %v321
        %v330 = vperm.slane %v159, 4
        %v331 = vmul.f32 %v282, %v330
        %v332 = vmul.f32 %v283, %v330
        %v333 = vmul.f32 %v284, %v330
        %v334 = vmul.f32 %v285, %v330
        %v335 = vmul.f32 %v286, %v330
        %v336 = vmul.f32 %v287, %v330
        %v337 = vmul.f32 %v288, %v330
        %v338 = vmul.f32 %v289, %v330
        %v347 = vrot.slane %v331, 1
        %v348 = vrot.slane %v332, 1
        %v349 = vsel %vm309, %v347, %v348
        %v350 = vrot.slane %v333, 1
        %v351 = vrot.slane %v334, 1
        %v352 = vsel %vm309, %v350, %v351
        %v353 = vrot.slane %v335, 1
        %v354 = vrot.slane %v336, 1
        %v355 = vsel %vm309, %v353, %v354
        %v356 = vrot.slane %v337, 1
        %v357 = vrot.slane %v338, 1
        %v358 = vsel %vm309, %v356, %v357
        %v363 = vadd.f32 %v326, %v349
        %v364 = vadd.f32 %v327, %v352
        %v365 = vadd.f32 %v328, %v355
        %v366 = vadd.f32 %v329, %v358
        %v367 = vperm.slane %v160, 6
        %v368 = vmul.f32 %v284, %v367
        %v369 = vmul.f32 %v285, %v367
        %v370 = vmul.f32 %v286, %v367
        %v371 = vmul.f32 %v287, %v367
        %v372 = vmul.f32 %v288, %v367
        %v373 = vmul.f32 %v289, %v367
        %v374 = vmul.f32 %v290, %v367
        %v375 = vmul.f32 %v291, %v367
        %v384 = vrot.slane %v368, 1
        %v385 = vrot.slane %v369, 1
        %v386 = vsel %vm309, %v384, %v385
        %v387 = vrot.slane %v370, 1
        %v388 = vrot.slane %v371, 1
        %v389 = vsel %vm309, %v387, %v388
        %v390 = vrot.slane %v372, 1
        %v391 = vrot.slane %v373, 1
        %v392 = vsel %vm309, %v390, %v391
        %v393 = vrot.slane %v374, 1
        %v394 = vrot.slane %v375, 1
        %v395 = vsel %vm309, %v393, %v394
        %v400 = vadd.f32 %v363, %v386
        %v401 = vadd.f32 %v364, %v389
        %v402 = vadd.f32 %v365, %v392
        %v403 = vadd.f32 %v366, %v395
        %v404 = vld [vmem:[%s200] sm:$0xfe]
        %v405 = vld [vmem:[%s200 + $0x10] sm:$0x1]
        %v406 = vld [vmem:[%s200 + $0x40] sm:$0xfe]
        %v407 = vld [vmem:[%s200 + $0x50] sm:$0x1]
        %v408 = vld [vmem:[%s200 + $0x80] sm:$0xfe]
        %v409 = vld [vmem:[%s200 + $0x90] sm:$0x1]
        %v410 = vld [vmem:[%s200 + $0xc0] sm:$0xfe]
        %v411 = vld [vmem:[%s200 + $0xd0] sm:$0x1]
        %v412 = vld [vmem:[%s200 + $0x100] sm:$0xfe]
        %v413 = vld [vmem:[%s200 + $0x110] sm:$0x1]
        %v414 = vperm.slane %v158, 7
        %v415 = vmul.f32 %v404, %v414
        %v416 = vmul.f32 %v405, %v414
        %v417 = vmul.f32 %v406, %v414
        %v418 = vmul.f32 %v407, %v414
        %v419 = vmul.f32 %v408, %v414
        %v420 = vmul.f32 %v409, %v414
        %v421 = vmul.f32 %v410, %v414
        %v422 = vmul.f32 %v411, %v414
        %v431 = vrot.slane %v415, 1
        %v432 = vrot.slane %v416, 1
        %v433 = vsel %vm309, %v431, %v432
        %v434 = vrot.slane %v417, 1
        %v435 = vrot.slane %v418, 1
        %v436 = vsel %vm309, %v434, %v435
        %v437 = vrot.slane %v419, 1
        %v438 = vrot.slane %v420, 1
        %v439 = vsel %vm309, %v437, %v438
        %v440 = vrot.slane %v421, 1
        %v441 = vrot.slane %v422, 1
        %v442 = vsel %vm309, %v440, %v441
        %v447 = vadd.f32 %v400, %v433
        %v448 = vadd.f32 %v401, %v436
        %v449 = vadd.f32 %v402, %v439
        %v450 = vadd.f32 %v403, %v442
        %v451 = vperm.slane %v160, 1
        %v452 = vmul.f32 %v406, %v451
        %v453 = vmul.f32 %v407, %v451
        %v454 = vmul.f32 %v408, %v451
        %v455 = vmul.f32 %v409, %v451
        %v456 = vmul.f32 %v410, %v451
        %v457 = vmul.f32 %v411, %v451
        %v458 = vmul.f32 %v412, %v451
        %v459 = vmul.f32 %v413, %v451
        %v468 = vrot.slane %v452, 1
        %v469 = vrot.slane %v453, 1
        %v470 = vsel %vm309, %v468, %v469
        %v471 = vrot.slane %v454, 1
        %v472 = vrot.slane %v455, 1
        %v473 = vsel %vm309, %v471, %v472
        %v474 = vrot.slane %v456, 1
        %v475 = vrot.slane %v457, 1
        %v476 = vsel %vm309, %v474, %v475
        %v477 = vrot.slane %v458, 1
        %v478 = vrot.slane %v459, 1
        %v479 = vsel %vm309, %v477, %v478
        %v484 = vadd.f32 %v447, %v470
        %v485 = vadd.f32 %v448, %v473
        %v486 = vadd.f32 %v449, %v476
        %v487 = vadd.f32 %v450, %v479
        %v488 = vld [vmem:[%s164 + $0x8] sm:$0xfe]
        %v489 = vld [vmem:[%s164 + $0x18] sm:$0x1]
        %v490 = vld [vmem:[%s164 + $0x48] sm:$0xfe]
        %v491 = vld [vmem:[%s164 + $0x58] sm:$0x1]
        %v492 = vld [vmem:[%s164 + $0x88] sm:$0xfe]
        %v493 = vld [vmem:[%s164 + $0x98] sm:$0x1]
        %v494 = vld [vmem:[%s164 + $0xc8] sm:$0xfe]
        %v495 = vld [vmem:[%s164 + $0xd8] sm:$0x1]
        %v496 = vld [vmem:[%s164 + $0x108] sm:$0xfe]
        %v497 = vld [vmem:[%s164 + $0x118] sm:$0x1]
        %v498 = vld [vmem:[%s164 + $0x148] sm:$0xfe]
        %v499 = vld [vmem:[%s164 + $0x158] sm:$0x1]
        %v500 = vperm.slane %v158, 3
        %v501 = vmul.f32 %v488, %v500
        %v502 = vmul.f32 %v489, %v500
        %v503 = vmul.f32 %v490, %v500
        %v504 = vmul.f32 %v491, %v500
        %v505 = vmul.f32 %v492, %v500
        %v506 = vmul.f32 %v493, %v500
        %v507 = vmul.f32 %v494, %v500
        %v508 = vmul.f32 %v495, %v500
        %v517 = vrot.slane %v501, 1
        %v518 = vrot.slane %v502, 1
        %v519 = vsel %vm309, %v517, %v518
        %v520 = vrot.slane %v503, 1
        %v521 = vrot.slane %v504, 1
        %v522 = vsel %vm309, %v520, %v521
        %v523 = vrot.slane %v505, 1
        %v524 = vrot.slane %v506, 1
        %v525 = vsel %vm309, %v523, %v524
        %v526 = vrot.slane %v507, 1
        %v527 = vrot.slane %v508, 1
        %v528 = vsel %vm309, %v526, %v527
        %v533 = vadd.f32 %v484, %v519
        %v534 = vadd.f32 %v485, %v522
        %v535 = vadd.f32 %v486, %v525
        %v536 = vadd.f32 %v487, %v528
        %v537 = vperm.slane %v159, 5
        %v538 = vmul.f32 %v490, %v537
        %v539 = vmul.f32 %v491, %v537
        %v540 = vmul.f32 %v492, %v537
        %v541 = vmul.f32 %v493, %v537
        %v542 = vmul.f32 %v494, %v537
        %v543 = vmul.f32 %v495, %v537
        %v544 = vmul.f32 %v496, %v537
        %v545 = vmul.f32 %v497, %v537
        %v554 = vrot.slane %v538, 1
        %v555 = vrot.slane %v539, 1
        %v556 = vsel %vm309, %v554, %v555
        %v557 = vrot.slane %v540, 1
        %v558 = vrot.slane %v541, 1
        %v559 = vsel %vm309, %v557, %v558
        %v560 = vrot.slane %v542, 1
        %v561 = vrot.slane %v543, 1
        %v562 = vsel %vm309, %v560, %v561
        %v563 = vrot.slane %v544, 1
        %v564 = vrot.slane %v545, 1
        %v565 = vsel %vm309, %v563, %v564
        %v570 = vadd.f32 %v533, %v556
        %v571 = vadd.f32 %v534, %v559
        %v572 = vadd.f32 %v535, %v562
        %v573 = vadd.f32 %v536, %v565
        %v574 = vperm.slane %v160, 7
        %v575 = vmul.f32 %v492, %v574
        %v576 = vmul.f32 %v493, %v574
        %v577 = vmul.f32 %v494, %v574
        %v578 = vmul.f32 %v495, %v574
        %v579 = vmul.f32 %v496, %v574
        %v580 = vmul.f32 %v497, %v574
        %v581 = vmul.f32 %v498, %v574
        %v582 = vmul.f32 %v499, %v574
        %v591 = vrot.slane %v575, 1
        %v592 = vrot.slane %v576, 1
        %v593 = vsel %vm309, %v591, %v592
        %v594 = vrot.slane %v577, 1
        %v595 = vrot.slane %v578, 1
        %v596 = vsel %vm309, %v594, %v595
        %v597 = vrot.slane %v579, 1
        %v598 = vrot.slane %v580, 1
        %v599 = vsel %vm309, %v597, %v598
        %v600 = vrot.slane %v581, 1
        %v601 = vrot.slane %v582, 1
        %v602 = vsel %vm309, %v600, %v601
        %v607 = vadd.f32 %v570, %v593
        %v608 = vadd.f32 %v571, %v596
        %v609 = vadd.f32 %v572, %v599
        %v610 = vadd.f32 %v573, %v602
        %v611 = vld [vmem:[%s200 + $0x8] sm:$0xfe]
        %v612 = vld [vmem:[%s200 + $0x18] sm:$0x1]
        %v613 = vld [vmem:[%s200 + $0x48] sm:$0xfe]
        %v614 = vld [vmem:[%s200 + $0x58] sm:$0x1]
        %v615 = vld [vmem:[%s200 + $0x88] sm:$0xfe]
        %v616 = vld [vmem:[%s200 + $0x98] sm:$0x1]
        %v617 = vld [vmem:[%s200 + $0xc8] sm:$0xfe]
        %v618 = vld [vmem:[%s200 + $0xd8] sm:$0x1]
        %v619 = vld [vmem:[%s200 + $0x108] sm:$0xfe]
        %v620 = vld [vmem:[%s200 + $0x118] sm:$0x1]
        %v621 = vperm.slane %v159, 0
        %v622 = vmul.f32 %v611, %v621
        %v623 = vmul.f32 %v612, %v621
        %v624 = vmul.f32 %v613, %v621
        %v625 = vmul.f32 %v614, %v621
        %v626 = vmul.f32 %v615, %v621
        %v627 = vmul.f32 %v616, %v621
        %v628 = vmul.f32 %v617, %v621
        %v629 = vmul.f32 %v618, %v621
        %v638 = vrot.slane %v622, 1
        %v639 = vrot.slane %v623, 1
        %v640 = vsel %vm309, %v638, %v639
        %v641 = vrot.slane %v624, 1
        %v642 = vrot.slane %v625, 1
        %v643 = vsel %vm309, %v641, %v642
        %v644 = vrot.slane %v626, 1
        %v645 = vrot.slane %v627, 1
        %v646 = vsel %vm309, %v644, %v645
        %v647 = vrot.slane %v628, 1
        %v648 = vrot.slane %v629, 1
        %v649 = vsel %vm309, %v647, %v648
        %v654 = vadd.f32 %v607, %v640
        %v655 = vadd.f32 %v608, %v643
        %v656 = vadd.f32 %v609, %v646
        %v657 = vadd.f32 %v610, %v649
        %v658 = vperm.slane %v160, 2
        %v659 = vmul.f32 %v613, %v658
        %v660 = vmul.f32 %v614, %v658
        %v661 = vmul.f32 %v615, %v658
        %v662 = vmul.f32 %v616, %v658
        %v663 = vmul.f32 %v617, %v658
        %v664 = vmul.f32 %v618, %v658
        %v665 = vmul.f32 %v619, %v658
        %v666 = vmul.f32 %v620, %v658
        %v675 = vrot.slane %v659, 1
        %v676 = vrot.slane %v660, 1
        %v677 = vsel %vm309, %v675, %v676
        %v678 = vrot.slane %v661, 1
        %v679 = vrot.slane %v662, 1
        %v680 = vsel %vm309, %v678, %v679
        %v681 = vrot.slane %v663, 1
        %v682 = vrot.slane %v664, 1
        %v683 = vsel %vm309, %v681, %v682
        %v684 = vrot.slane %v665, 1
        %v685 = vrot.slane %v666, 1
        %v686 = vsel %vm309, %v684, %v685
        %v691 = vadd.f32 %v654, %v677
        %v692 = vadd.f32 %v655, %v680
        %v693 = vadd.f32 %v656, %v683
        %v694 = vadd.f32 %v657, %v686
        %v695 = vld [vmem:[%s164] sm:$0xfc]
        %v696 = vld [vmem:[%s164 + $0x10] sm:$0x3]
        %v697 = vld [vmem:[%s164 + $0x40] sm:$0xfc]
        %v698 = vld [vmem:[%s164 + $0x50] sm:$0x3]
        %v699 = vld [vmem:[%s164 + $0x80] sm:$0xfc]
        %v700 = vld [vmem:[%s164 + $0x90] sm:$0x3]
        %v701 = vld [vmem:[%s164 + $0xc0] sm:$0xfc]
        %v702 = vld [vmem:[%s164 + $0xd0] sm:$0x3]
        %v703 = vld [vmem:[%s164 + $0x100] sm:$0xfc]
        %v704 = vld [vmem:[%s164 + $0x110] sm:$0x3]
        %v705 = vld [vmem:[%s164 + $0x140] sm:$0xfc]
        %v706 = vld [vmem:[%s164 + $0x150] sm:$0x3]
        %v707 = vperm.slane %v158, 4
        %v708 = vmul.f32 %v695, %v707
        %v709 = vmul.f32 %v696, %v707
        %v710 = vmul.f32 %v697, %v707
        %v711 = vmul.f32 %v698, %v707
        %v712 = vmul.f32 %v699, %v707
        %v713 = vmul.f32 %v700, %v707
        %v714 = vmul.f32 %v701, %v707
        %v715 = vmul.f32 %v702, %v707
        %vm724 = vcmask 1045504
        %v725 = vrot.slane %v708, 2
        %v726 = vrot.slane %v709, 2
        %v727 = vsel %vm724, %v725, %v726
        %v728 = vrot.slane %v710, 2
        %v729 = vrot.slane %v711, 2
        %v730 = vsel %vm724, %v728, %v729
        %v731 = vrot.slane %v712, 2
        %v732 = vrot.slane %v713, 2
        %v733 = vsel %vm724, %v731, %v732
        %v734 = vrot.slane %v714, 2
        %v735 = vrot.slane %v715, 2
        %v736 = vsel %vm724, %v734, %v735
        %v741 = vadd.f32 %v691, %v727
        %v742 = vadd.f32 %v692, %v730
        %v743 = vadd.f32 %v693, %v733
        %v744 = vadd.f32 %v694, %v736
        %v745 = vperm.slane %v159, 6
        %v746 = vmul.f32 %v697, %v745
        %v747 = vmul.f32 %v698, %v745
        %v748 = vmul.f32 %v699, %v745
        %v749 = vmul.f32 %v700, %v745
        %v750 = vmul.f32 %v701, %v745
        %v751 = vmul.f32 %v702, %v745
        %v752 = vmul.f32 %v703, %v745
        %v753 = vmul.f32 %v704, %v745
        %v762 = vrot.slane %v746, 2
        %v763 = vrot.slane %v747, 2
        %v764 = vsel %vm724, %v762, %v763
        %v765 = vrot.slane %v748, 2
        %v766 = vrot.slane %v749, 2
        %v767 = vsel %vm724, %v765, %v766
        %v768 = vrot.slane %v750, 2
        %v769 = vrot.slane %v751, 2
        %v770 = vsel %vm724, %v768, %v769
        %v771 = vrot.slane %v752, 2
        %v772 = vrot.slane %v753, 2
        %v773 = vsel %vm724, %v771, %v772
        %v778 = vadd.f32 %v741, %v764
        %v779 = vadd.f32 %v742, %v767
        %v780 = vadd.f32 %v743, %v770
        %v781 = vadd.f32 %v744, %v773
        %v782 = vperm.slane %v161, 0
        %v783 = vmul.f32 %v699, %v782
        %v784 = vmul.f32 %v700, %v782
        %v785 = vmul.f32 %v701, %v782
        %v786 = vmul.f32 %v702, %v782
        %v787 = vmul.f32 %v703, %v782
        %v788 = vmul.f32 %v704, %v782
        %v789 = vmul.f32 %v705, %v782
        %v790 = vmul.f32 %v706, %v782
        %v799 = vrot.slane %v783, 2
        %v800 = vrot.slane %v784, 2
        %v801 = vsel %vm724, %v799, %v800
        %v802 = vrot.slane %v785, 2
        %v803 = vrot.slane %v786, 2
        %v804 = vsel %vm724, %v802, %v803
        %v805 = vrot.slane %v787, 2
        %v806 = vrot.slane %v788, 2
        %v807 = vsel %vm724, %v805, %v806
        %v808 = vrot.slane %v789, 2
        %v809 = vrot.slane %v790, 2
        %v810 = vsel %vm724, %v808, %v809
        %v815 = vadd.f32 %v778, %v801
        %v816 = vadd.f32 %v779, %v804
        %v817 = vadd.f32 %v780, %v807
        %v818 = vadd.f32 %v781, %v810
        %v819 = vld [vmem:[%s200] sm:$0xfc]
        %v820 = vld [vmem:[%s200 + $0x10] sm:$0x3]
        %v821 = vld [vmem:[%s200 + $0x40] sm:$0xfc]
        %v822 = vld [vmem:[%s200 + $0x50] sm:$0x3]
        %v823 = vld [vmem:[%s200 + $0x80] sm:$0xfc]
        %v824 = vld [vmem:[%s200 + $0x90] sm:$0x3]
        %v825 = vld [vmem:[%s200 + $0xc0] sm:$0xfc]
        %v826 = vld [vmem:[%s200 + $0xd0] sm:$0x3]
        %v827 = vld [vmem:[%s200 + $0x100] sm:$0xfc]
        %v828 = vld [vmem:[%s200 + $0x110] sm:$0x3]
        %v829 = vperm.slane %v159, 1
        %v830 = vmul.f32 %v819, %v829
        %v831 = vmul.f32 %v820, %v829
        %v832 = vmul.f32 %v821, %v829
        %v833 = vmul.f32 %v822, %v829
        %v834 = vmul.f32 %v823, %v829
        %v835 = vmul.f32 %v824, %v829
        %v836 = vmul.f32 %v825, %v829
        %v837 = vmul.f32 %v826, %v829
        %v846 = vrot.slane %v830, 2
        %v847 = vrot.slane %v831, 2
        %v848 = vsel %vm724, %v846, %v847
        %v849 = vrot.slane %v832, 2
        %v850 = vrot.slane %v833, 2
        %v851 = vsel %vm724, %v849, %v850
        %v852 = vrot.slane %v834, 2
        %v853 = vrot.slane %v835, 2
        %v854 = vsel %vm724, %v852, %v853
        %v855 = vrot.slane %v836, 2
        %v856 = vrot.slane %v837, 2
        %v857 = vsel %vm724, %v855, %v856
        %v862 = vadd.f32 %v815, %v848
        %v863 = vadd.f32 %v816, %v851
        %v864 = vadd.f32 %v817, %v854
        %v865 = vadd.f32 %v818, %v857
        %v866 = vperm.slane %v160, 3
        %v867 = vmul.f32 %v821, %v866
        %v868 = vmul.f32 %v822, %v866
        %v869 = vmul.f32 %v823, %v866
        %v870 = vmul.f32 %v824, %v866
        %v871 = vmul.f32 %v825, %v866
        %v872 = vmul.f32 %v826, %v866
        %v873 = vmul.f32 %v827, %v866
        %v874 = vmul.f32 %v828, %v866
        %v883 = vrot.slane %v867, 2
        %v884 = vrot.slane %v868, 2
        %v885 = vsel %vm724, %v883, %v884
        %v886 = vrot.slane %v869, 2
        %v887 = vrot.slane %v870, 2
        %v888 = vsel %vm724, %v886, %v887
        %v889 = vrot.slane %v871, 2
        %v890 = vrot.slane %v872, 2
        %v891 = vsel %vm724, %v889, %v890
        %v892 = vrot.slane %v873, 2
        %v893 = vrot.slane %v874, 2
        %v894 = vsel %vm724, %v892, %v893
        %v899 = vadd.f32 %v862, %v885
        %v900 = vadd.f32 %v863, %v888
        %v901 = vadd.f32 %v864, %v891
        %v902 = vadd.f32 %v865, %v894
        %903 = vst [vmem:[%s150] sm:$0xff] %v899
        %904 = vst [vmem:[%s150 + $0x8] sm:$0xff] %v900
        %905 = vst [vmem:[%s150 + $0x10] sm:$0xff] %v901
        %906 = vst [vmem:[%s150 + $0x18] sm:$0xff] %v902
        %s907 = sand.u32 %s85, 1
        %s908 = scalar_lea.sflag [#allocation3], %s907
        %s909 = sand.u32 %s85, 1
        %s910 = smul.addr %s909, 32
        %s911 = scalar_lea.vmem [#allocation2], %s910
        // Predicated region
        $region29: #{tpu_custom_call.1} parent=27 // pred_check
          %p912 = pneg %p95
        $region30: #{tpu_custom_call.1} parent=27 // pred_check_branch
          %914 = sbr.rel (%p912) target = $region32
        $region31: #{tpu_custom_call.1} parent=27 // pred_region
          %s915 = smul.u32 4, %s21
          %917 = vsyncadd %s908, 0
          %s918 = smul.addr %s20, 8
          %s919 = sadd.s32 %s915, %s918
          %s920 = smul.addr %s919, 8
          %s921 = scalar_lea.hbm %s2, %s920
          %s922 = sshll.u32 %s911, 4
          %s923 = int_to_ptr.vmem [resolvable:$true] %s922
          %s924 = sshll.u32 %s921, 4
          %s925 = int_to_ptr.hbm [resolvable:$true] %s924
          %930 = dma.vmem_to_hbm [thread:$0]  %s923, 512, %s925, %s908, 128, 128, 8
        $region32: #{tpu_custom_call.1} parent=27 // pred_fallthru
          _
      $region28: #{tpu_custom_call.1} parent=5 // pred_fallthru
        _
      %p931 = scmp.le.s32.totalorder 2, %s11
      // Predicated region
      $region33: #{tpu_custom_call.1} parent=5 // pred_check
        %p932 = pneg %p931
      $region34: #{tpu_custom_call.1} parent=5 // pred_check_branch
        %934 = sbr.rel (%p932) target = $region36
      $region35: #{tpu_custom_call.1} parent=5 // pred_region
        %s935 = ssub.s32 %s11, 2
        // Predicated region
        $region37: #{tpu_custom_call.1} parent=35 // pred_check
          %p936 = pneg %p101
        $region38: #{tpu_custom_call.1} parent=35 // pred_check_branch
          %938 = sbr.rel (%p936) target = $region40
        $region39: #{tpu_custom_call.1} parent=35 // pred_region
          %s939 = sand.u32 %s86, 1
          %s940 = scalar_lea.sflag [#allocation3], %s939
          %s941 = sand.u32 %s86, 1
          %s942 = smul.addr %s941, 32
          %s943 = scalar_lea.vmem [#allocation2], %s942
          %945 = dma.done %s940, 512
        $region40: #{tpu_custom_call.1} parent=35 // pred_fallthru
          _
      $region36: #{tpu_custom_call.1} parent=5 // pred_fallthru
        _
    $region6: #{tpu_custom_call.1} parent=1 // loop_footer
      %s15 = sadd.s32 1, %s11
    $region7: #{tpu_custom_call.1} parent=1 // loop_footer_branch
      %10 = sbr.rel target = $region3
    $region8: #{tpu_custom_call.1} parent=1 // loop_exit
      _
    %946 = vsyncpa [#allocation3], 1
    %s947 = scalar_lea.sflag [#allocation3], 1
    %948 = vsyncpa %s947, 1

</llo_original>
